<compile_context>
chip_gen: v7x
topology: tpu7x:2x2x1
jax: 0.10.0
libtpu: 0.0.40
codegen_flags: <defaults>
</compile_context>

<pallas_src>
import math

import jax
import jax.numpy as jnp
from jax.experimental import pallas as pl
from jax.experimental.pallas import tpu as pltpu


# ---------------------------------------------------------------------------
# Fused kernel factory
# ---------------------------------------------------------------------------
def _make_class_loss_kernel(l, inv_b, targets, row_spans):
    """BCE(mean over batch) + l * MSE(per-weight L2 norms, target norms).

    Static (trace-time) constants: l, 1/batch, per-weight target norms
    (computed with Python double-precision sqrt, matching torch's float64
    target tensor), and the (row_offset, n_rows) span of each weight inside
    the single concatenated weight slab.
    """
    has_reg = l > 0.0 and len(row_spans) > 0
    inv_w = 1.0 / len(row_spans) if row_spans else 0.0

    def kernel(*refs):
        if has_reg:
            x_ref, y_ref, w_ref, o_ref, acc_ref = refs
        else:
            x_ref, y_ref, o_ref, acc_ref = refs

        step = pl.program_id(0)

        @pl.when(step == 0)
        def _init():
            acc_ref[...] = jnp.zeros_like(acc_ref)

        x = x_ref[...].astype(jnp.float32)
        y = y_ref[...].astype(jnp.float32)

        # log(sigmoid(x)) / log(1 - sigmoid(x)) in logits form, clamped at
        # -100 to match torch.nn.BCELoss on sigmoid outputs:
        #   log(sigmoid(x))   = min(x, 0)  - log1p(exp(-|x|))
        #   log(1-sigmoid(x)) = min(-x, 0) - log1p(exp(-|x|))
        log1p_term = jnp.log1p(jnp.exp(-jnp.abs(x)))
        log_p = jnp.maximum(jnp.minimum(x, 0.0) - log1p_term, -100.0)
        log_1mp = jnp.maximum(jnp.minimum(-x, 0.0) - log1p_term, -100.0)

        # Hot loop: pure VALU accumulation into the VMEM scratch; the XLU
        # reduction is deferred to the epilogue below.
        acc_ref[...] += -(y * log_p + (1.0 - y) * log_1mp)

        @pl.when(step == pl.num_programs(0) - 1)
        def _finalize():
            loss = jnp.sum(acc_ref[...]) * jnp.float32(inv_b)
            if has_reg:
                reg = jnp.float32(0.0)
                for (r0, nr), tgt in zip(row_spans, targets):
                    w = w_ref[r0:r0 + nr, :].astype(jnp.float32)
                    norm = jnp.sqrt(jnp.sum(w * w))
                    d = norm - jnp.float32(tgt)
                    reg = reg + d * d
                loss = loss + jnp.float32(l) * reg * jnp.float32(inv_w)
            o_ref[0, 0] = loss

    return kernel


# ---------------------------------------------------------------------------
# Wrapper
# ---------------------------------------------------------------------------
def _pick_block_rows(n_rows, max_rows=512):
    """Largest divisor of n_rows that is <= max_rows, preferring multiples of
    8 (exact blocks -> no edge masking, sublane-aligned)."""
    if n_rows <= max_rows:
        return n_rows
    for br in range(max_rows - max_rows % 8, 7, -8):
        if n_rows % br == 0:
            return br
    for br in range(max_rows, 0, -1):
        if n_rows % br == 0:
            return br
    return 1


def class_loss(labels, output, weights, l=0.1, *, max_block_rows=512):
    """JAX/Pallas equivalent of
    ClassLoss(l, reduction='mean', transform=sigmoid).forward(labels, output,
    weights).  Single fused pallas_call returning a scalar."""
    x_flat = jnp.reshape(jnp.squeeze(output), (-1,))
    y_flat = jnp.reshape(labels, (-1,))
    n_batch = int(x_flat.size)
    if int(y_flat.size) != n_batch:
        raise ValueError(
            f"labels ({int(y_flat.size)}) and squeezed output ({n_batch}) "
            "element counts differ")

    # Lane-dense presentation of the batch.
    if n_batch % 128 == 0:
        lanes = 128
        rows = n_batch // 128
    else:
        lanes = n_batch
        rows = 1
    x2 = x_flat.reshape(rows, lanes)
    y2 = y_flat.reshape(rows, lanes)

    block_rows = _pick_block_rows(rows, max_block_rows)
    n_steps = rows // block_rows

    # One concatenated, lane-dense weight slab.
    row_spans, targets, w_chunks = [], [], []
    if l > 0.0:
        row_off = 0
        for w in weights:
            flat = jnp.reshape(w, (-1,))
            nr = -(-int(flat.size) // 128)           # ceil division
            pad = nr * 128 - int(flat.size)
            if pad:
                flat = jnp.pad(flat, (0, pad))       # zeros don't change norm
            w_chunks.append(flat.reshape(nr, 128))
            row_spans.append((row_off, nr))
            # float64 sqrt on the static last-dim size (matches torch's
            # float64 target_norms), baked in as a trace-time constant.
            targets.append(math.sqrt(float(w.shape[-1])))
            row_off += nr

    kernel = _make_class_loss_kernel(float(l), 1.0 / n_batch,
                                     tuple(targets), tuple(row_spans))

    in_specs = [pl.BlockSpec((block_rows, lanes), lambda i: (i, 0)),
                pl.BlockSpec((block_rows, lanes), lambda i: (i, 0))]
    inputs = [x2, y2]
    if row_spans:
        w_slab = jnp.concatenate(w_chunks, axis=0)
        w_rows = int(w_slab.shape[0])
        in_specs.append(pl.BlockSpec((w_rows, 128), lambda i: (0, 0)))
        inputs.append(w_slab)

    out = pl.pallas_call(
        kernel,
        out_shape=jax.ShapeDtypeStruct((1, 1), jnp.float32),
        grid=(n_steps,),
        in_specs=in_specs,
        out_specs=pl.BlockSpec(memory_space=pltpu.MemorySpace.SMEM),
        scratch_shapes=[pltpu.VMEM((block_rows, lanes), jnp.float32)],
        compiler_params=pltpu.CompilerParams(
            dimension_semantics=("arbitrary",)),
    )(*inputs)
    return out[0, 0]


# ---------------------------------------------------------------------------
# Pure-JAX reference (uses the same -100 clamp torch.nn.BCELoss applies, so
# the comparison stays finite for large logits)
# ---------------------------------------------------------------------------
def _reference(labels, output, weights, l=0.1):
    loss = 0.0
    if l > 0.0 and weights:
        norms = jnp.stack([jnp.linalg.norm(w.reshape(-1)) for w in weights])
        target = jnp.sqrt(jnp.array([w.shape[-1] for w in weights],
                                    jnp.float32))
        loss = loss + l * jnp.mean((norms - target) ** 2)
    x = jnp.reshape(jnp.squeeze(output), (-1,)).astype(jnp.float32)
    y = jnp.reshape(labels, (-1,)).astype(jnp.float32)
    log_p = jnp.maximum(jax.nn.log_sigmoid(x), -100.0)
    log_1mp = jnp.maximum(jax.nn.log_sigmoid(-x), -100.0)
    bce = -(y * log_p + (1.0 - y) * log_1mp)
    return loss + jnp.mean(bce)


if __name__ == "__main__":
    key = jax.random.PRNGKey(0)
    k1, k2, k3, k4 = jax.random.split(key, 4)

    B, H, D = 128, 32, 16  # batch, hidden, input-feature sizes

    # Model outputs (logits) and binary labels (labels kept in bf16; the
    # kernel casts to f32 on load).
    output = jax.random.normal(k1, (B, 1), dtype=jnp.float32)
    labels = jax.random.bernoulli(k2, 0.5, (B,)).astype(jnp.bfloat16)

    # Deterministically initialized "network weights" (nn.Linear-style shapes).
    weights = [
        0.1 * jax.random.normal(k3, (H, D), dtype=jnp.float32),
        0.1 * jax.random.normal(k4, (1, H), dtype=jnp.float32),
    ]

    loss = jax.block_until_ready(class_loss(labels, output, weights, l=0.1))
    ref = jax.block_until_ready(_reference(labels, output, weights, l=0.1))
    assert jnp.allclose(loss, ref, rtol=1e-5, atol=1e-5), (loss, ref)

    print("KERNEL_OK")
</pallas_src>

<mosaic_0001>
module attributes {stable_mosaic.version = 11 : i64} {
  func.func @kernel(%arg0: i32, %arg1: memref<1x128xf32, #tpu.memory_space<vmem>>, %arg2: memref<1x128xbf16, #tpu.memory_space<vmem>>, %arg3: memref<5x128xf32, #tpu.memory_space<vmem>>, %arg4: memref<1x1xf32, #tpu.memory_space<smem>>, %arg5: memref<1x128xf32, #tpu.memory_space<vmem>>) attributes {dimension_semantics = [#tpu.dimension_semantics<arbitrary>], iteration_bounds = array<i64: 1>, scalar_prefetch = 0 : i64, scratch_operands = 1 : i64, tpu.core_type = #tpu.core_type<tc>, window_params = [{transform_indices = @transform_0, window_bounds = array<i64: 1, 128>}, {transform_indices = @transform_1, window_bounds = array<i64: 1, 128>}, {pipeline_mode = #tpu.pipeline_mode<synchronous>, transform_indices = @transform_2, window_bounds = array<i64: 5, 128>}, {transform_indices = @transform_3, window_bounds = array<i64: 1, 1>}]} {
    %c0_i32 = arith.constant 0 : i32
    %0 = arith.cmpi eq, %arg0, %c0_i32 : i32
    %1 = arith.extui %0 : i1 to i32
    %c0_i32_0 = arith.constant 0 : i32
    %2 = arith.cmpi ne, %1, %c0_i32_0 : i32
    scf.if %2 {
      %cst_17 = arith.constant 0.000000e+00 : f32
      %36 = vector.broadcast %cst_17 : f32 to vector<1x128xf32>
      %c0_18 = arith.constant 0 : index
      %c0_19 = arith.constant 0 : index
      %37 = vector.load %arg5[%c0_18, %c0_19] : memref<1x128xf32, #tpu.memory_space<vmem>>, vector<1x128xf32>
      tpu.vector_store %arg5[%c0_18, %c0_19], %36 {strides = array<i32>} : memref<1x128xf32, #tpu.memory_space<vmem>>, vector<1x128xf32>,
    } else {
    }
    %c0 = arith.constant 0 : index
    %c0_1 = arith.constant 0 : index
    %3 = vector.load %arg1[%c0, %c0_1] : memref<1x128xf32, #tpu.memory_space<vmem>>, vector<1x128xf32>
    %c0_2 = arith.constant 0 : index
    %c0_3 = arith.constant 0 : index
    %4 = vector.load %arg2[%c0_2, %c0_3] : memref<1x128xbf16, #tpu.memory_space<vmem>>, vector<1x128xbf16>
    %5 = arith.extf %4 : vector<1x128xbf16> to vector<1x128xf32>
    %6 = math.absf %3 : vector<1x128xf32>
    %cst = arith.constant 0.000000e+00 : f32
    %7 = vector.broadcast %cst : f32 to vector<1x128xf32>
    %8 = arith.subf %7, %6 : vector<1x128xf32>
    %9 = math.exp %8 : vector<1x128xf32>
    %10 = math.log1p %9 : vector<1x128xf32>
    %cst_4 = arith.constant 0.000000e+00 : f32
    %11 = vector.broadcast %cst_4 : f32 to vector<1x128xf32>
    %12 = arith.minimumf %3, %11 : vector<1x128xf32>
    %13 = arith.subf %12, %10 : vector<1x128xf32>
    %cst_5 = arith.constant -1.000000e+02 : f32
    %14 = vector.broadcast %cst_5 : f32 to vector<1x128xf32>
    %15 = arith.maximumf %13, %14 : vector<1x128xf32>
    %cst_6 = arith.constant 0.000000e+00 : f32
    %16 = vector.broadcast %cst_6 : f32 to vector<1x128xf32>
    %17 = arith.subf %16, %3 : vector<1x128xf32>
    %cst_7 = arith.constant 0.000000e+00 : f32
    %18 = vector.broadcast %cst_7 : f32 to vector<1x128xf32>
    %19 = arith.minimumf %17, %18 : vector<1x128xf32>
    %20 = arith.subf %19, %10 : vector<1x128xf32>
    %cst_8 = arith.constant -1.000000e+02 : f32
    %21 = vector.broadcast %cst_8 : f32 to vector<1x128xf32>
    %22 = arith.maximumf %20, %21 : vector<1x128xf32>
    %c0_9 = arith.constant 0 : index
    %c0_10 = arith.constant 0 : index
    %23 = vector.load %arg5[%c0_9, %c0_10] : memref<1x128xf32, #tpu.memory_space<vmem>>, vector<1x128xf32>
    %24 = arith.mulf %5, %15 : vector<1x128xf32>
    %cst_11 = arith.constant 1.000000e+00 : f32
    %25 = vector.broadcast %cst_11 : f32 to vector<1x128xf32>
    %26 = arith.subf %25, %5 : vector<1x128xf32>
    %27 = arith.mulf %26, %22 : vector<1x128xf32>
    %28 = arith.addf %24, %27 : vector<1x128xf32>
    %cst_12 = arith.constant 0.000000e+00 : f32
    %29 = vector.broadcast %cst_12 : f32 to vector<1x128xf32>
    %30 = arith.subf %29, %28 : vector<1x128xf32>
    %31 = arith.addf %23, %30 : vector<1x128xf32>
    %c0_13 = arith.constant 0 : index
    %c0_14 = arith.constant 0 : index
    %32 = vector.load %arg5[%c0_13, %c0_14] : memref<1x128xf32, #tpu.memory_space<vmem>>, vector<1x128xf32>
    tpu.vector_store %arg5[%c0_13, %c0_14], %31 {strides = array<i32>} : memref<1x128xf32, #tpu.memory_space<vmem>>, vector<1x128xf32>,
    %c0_i32_15 = arith.constant 0 : i32
    %33 = arith.cmpi eq, %arg0, %c0_i32_15 : i32
    %34 = arith.extui %33 : i1 to i32
    %c0_i32_16 = arith.constant 0 : i32
    %35 = arith.cmpi ne, %34, %c0_i32_16 : i32
    scf.if %35 {
      %c0_17 = arith.constant 0 : index
      %c0_18 = arith.constant 0 : index
      %36 = vector.load %arg5[%c0_17, %c0_18] : memref<1x128xf32, #tpu.memory_space<vmem>>, vector<1x128xf32>
      %37 = vector.shape_cast %36 : vector<1x128xf32> to vector<1x1x128xf32>
      %cst_19 = arith.constant dense<0.000000e+00> : vector<1xf32>
      %38 = vector.multi_reduction <add>, %37, %cst_19 [1, 2] : vector<1x1x128xf32> to vector<1xf32>
      %39 = vector.shape_cast %38 : vector<1xf32> to vector<1x1x1xf32>
      %40 = vector.extract %39[0, 0, 0] : f32 from vector<1x1x1xf32>
      %cst_20 = arith.constant 7.812500e-03 : f32
      %41 = arith.mulf %40, %cst_20 : f32
      %c0_21 = arith.constant 0 : index
      %c0_22 = arith.constant 0 : index
      %42 = vector.load %arg3[%c0_21, %c0_22] : memref<5x128xf32, #tpu.memory_space<vmem>>, vector<4x128xf32>
      %43 = arith.mulf %42, %42 : vector<4x128xf32>
      %44 = vector.shape_cast %43 : vector<4x128xf32> to vector<1x4x128xf32>
      %cst_23 = arith.constant dense<0.000000e+00> : vector<1xf32>
      %45 = vector.multi_reduction <add>, %44, %cst_23 [1, 2] : vector<1x4x128xf32> to vector<1xf32>
      %46 = vector.shape_cast %45 : vector<1xf32> to vector<1x1x1xf32>
      %47 = vector.extract %46[0, 0, 0] : f32 from vector<1x1x1xf32>
      %48 = math.sqrt %47 : f32
      %cst_24 = arith.constant 4.000000e+00 : f32
      %49 = arith.subf %48, %cst_24 : f32
      %50 = arith.mulf %49, %49 : f32
      %cst_25 = arith.constant 0.000000e+00 : f32
      %51 = arith.addf %cst_25, %50 : f32
      %c4 = arith.constant 4 : index
      %c0_26 = arith.constant 0 : index
      %52 = vector.load %arg3[%c4, %c0_26] : memref<5x128xf32, #tpu.memory_space<vmem>>, vector<1x128xf32>
      %53 = arith.mulf %52, %52 : vector<1x128xf32>
      %54 = vector.shape_cast %53 : vector<1x128xf32> to vector<1x1x128xf32>
      %cst_27 = arith.constant dense<0.000000e+00> : vector<1xf32>
      %55 = vector.multi_reduction <add>, %54, %cst_27 [1, 2] : vector<1x1x128xf32> to vector<1xf32>
      %56 = vector.shape_cast %55 : vector<1xf32> to vector<1x1x1xf32>
      %57 = vector.extract %56[0, 0, 0] : f32 from vector<1x1x1xf32>
      %58 = math.sqrt %57 : f32
      %cst_28 = arith.constant 5.65685415 : f32
      %59 = arith.subf %58, %cst_28 : f32
      %60 = arith.mulf %59, %59 : f32
      %61 = arith.addf %51, %60 : f32
      %cst_29 = arith.constant 1.000000e-01 : f32
      %62 = arith.mulf %cst_29, %61 : f32
      %cst_30 = arith.constant 5.000000e-01 : f32
      %63 = arith.mulf %62, %cst_30 : f32
      %64 = arith.addf %41, %63 : f32
      %c0_31 = arith.constant 0 : index
      %c0_32 = arith.constant 0 : index
      %65 = memref.load %arg4[%c0_31, %c0_32] : memref<1x1xf32, #tpu.memory_space<smem>>
      memref.store %64, %arg4[%c0_31, %c0_32] : memref<1x1xf32, #tpu.memory_space<smem>>
    } else {
    }
    return
  }
  func.func @transform_0(%arg0: i32) -> (i32, i32) {
    %c0_i32 = arith.constant 0 : i32
    %c0_i32_0 = arith.constant 0 : i32
    return %arg0, %c0_i32 : i32, i32
  }
  func.func @transform_1(%arg0: i32) -> (i32, i32) {
    %c0_i32 = arith.constant 0 : i32
    %c0_i32_0 = arith.constant 0 : i32
    return %arg0, %c0_i32 : i32, i32
  }
  func.func @transform_2(%arg0: i32) -> (i32, i32) {
    %c0_i32 = arith.constant 0 : i32
    %c0_i32_0 = arith.constant 0 : i32
    %c0_i32_1 = arith.constant 0 : i32
    return %c0_i32, %c0_i32_0 : i32, i32
  }
  func.func @transform_3(%arg0: i32) -> (i32, i32) {
    %c0_i32 = arith.constant 0 : i32
    %c0_i32_0 = arith.constant 0 : i32
    %c0_i32_1 = arith.constant 0 : i32
    return %c0_i32, %c0_i32_0 : i32, i32
  }
}

</mosaic_0001>

<llo_original>
// kernel: tpu_custom_call.1
$region0: #{tpu_custom_call.1}
  #allocation0 [shape = 'u32[]', space=smem, size = 0x4, offset = 0x4, fixed_abs, tag = 'smem constant byte address 0x4 - core index']
  #allocation1 [shape = 'u32[144,128]{1,0:T(1,128)}', space=vmem, size = 0x12000, scoped, tag = 'internal scratch']
  #allocation2 [shape = 'f32[1,128]{1,0:T(1,128)}', space=vmem, size = 0x200, scoped, tag = 'scratch operand']
  %s0 = inlined_call_operand.hbm [shape: f32[1,128], index: 0, kind: input, shape index: {}]
  %s1 = inlined_call_operand.vmem [shape: bf16[1,128], index: 1, kind: input, shape index: {}]
  %s2 = inlined_call_operand.hbm [shape: f32[5,128], index: 2, kind: input, shape index: {}]
  %s3 = inlined_call_operand.hbm [shape: f32[1,1], index: 3, kind: output, shape index: {}]
  %s4 = sld [smem:[#allocation0]]
  $region38: #{tpu_custom_call.1} parent=0
    _
  %s6 = ssub.s32 1, %s4
  %s7 = scalar_select 0, %s6, %s4
  $region1: #{tpu_custom_call.1} parent=0
    #allocation3 [shape = 'u8[512]{0}', space=vmem, size = 0x400, scoped, tag = 'input window, operand 0, single buffered']
    #allocation4 [shape = 's32[1]{0}', space=sflag, size = 0x4, scoped, tag = 'scoped memory for tpu_custom_call.1']
    #allocation5 [shape = 's32[1]{0}', space=sflag, size = 0x4, scoped, tag = 'scoped memory for tpu_custom_call.1']
    #allocation6 [shape = 'u8[4096]{0}', space=vmem, size = 0x1000, scoped, tag = 'input window, operand 2, single buffered']
    #allocation7 [shape = 's32[1]{0}', space=sflag, size = 0x4, scoped, tag = 'scoped memory for tpu_custom_call.1']
    #allocation8 [shape = 'u8[512]{0}', space=smem, size = 0x200, scoped, tag = 'output window, operand 0, single buffered']
    %8 = vsyncpa [#allocation4], 0
    %9 = vsyncpa [#allocation7], 0
    %10 = vsyncpa [#allocation5], 0
    // Predicated region
    $region2: #{tpu_custom_call.1} parent=1 // pred_check
      _
    $region3: #{tpu_custom_call.1} parent=1 // pred_check_branch
      %12 = sbr.rel (0) target = $region5
    $region4: #{tpu_custom_call.1} parent=1 // pred_region
      %s14 = ssub.s32 16, 16
      %15 = vsyncadd [#allocation4], %s14
      %s17 = sshll.u32 [#allocation3], 4
      %s18 = int_to_ptr.vmem [resolvable:$true] %s17
      %20 = dma.hbm_to_vmem [thread:$0]  %s0, 16, %s18, [#allocation4]
    $region5: #{tpu_custom_call.1} parent=1 // pred_fallthru
      _
    // Predicated region
    $region6: #{tpu_custom_call.1} parent=1 // pred_check
      _
    $region7: #{tpu_custom_call.1} parent=1 // pred_check_branch
      %22 = sbr.rel (0) target = $region9
    $region8: #{tpu_custom_call.1} parent=1 // pred_region
      _
    $region9: #{tpu_custom_call.1} parent=1 // pred_fallthru
      _
    // Predicated region
    $region10: #{tpu_custom_call.1} parent=1 // pred_check
      _
    $region11: #{tpu_custom_call.1} parent=1 // pred_check_branch
      %24 = sbr.rel (0) target = $region13
    $region12: #{tpu_custom_call.1} parent=1 // pred_region
      %s26 = ssub.s32 128, 128
      %27 = vsyncadd [#allocation7], %s26
      %s29 = sshll.u32 [#allocation6], 4
      %s30 = int_to_ptr.vmem [resolvable:$true] %s29
      %32 = dma.hbm_to_vmem [thread:$0]  %s2, 128, %s30, [#allocation7]
    $region13: #{tpu_custom_call.1} parent=1 // pred_fallthru
      _
    // Predicated region
    $region14: #{tpu_custom_call.1} parent=1 // pred_check
      _
    $region15: #{tpu_custom_call.1} parent=1 // pred_check_branch
      %34 = sbr.rel (0) target = $region17
    $region16: #{tpu_custom_call.1} parent=1 // pred_region
      %35 = dma.done [#allocation4], 16
    $region17: #{tpu_custom_call.1} parent=1 // pred_fallthru
      _
    // Predicated region
    $region18: #{tpu_custom_call.1} parent=1 // pred_check
      _
    $region19: #{tpu_custom_call.1} parent=1 // pred_check_branch
      %37 = sbr.rel (0) target = $region21
    $region20: #{tpu_custom_call.1} parent=1 // pred_region
      %38 = dma.done [#allocation7], 128
    $region21: #{tpu_custom_call.1} parent=1 // pred_fallthru
      _
    %p39 = scmp.eq.s32.totalorder 0, 0
    // Predicated region
    $region22: #{tpu_custom_call.1} parent=1 // pred_check
      %p40 = pneg %p39
    $region23: #{tpu_custom_call.1} parent=1 // pred_check_branch
      %42 = sbr.rel (%p40) target = $region25
    $region24: #{tpu_custom_call.1} parent=1 // pred_region
      %43 = vst [vmem:[#allocation2] sm:$0x1] 0.0
    $region25: #{tpu_custom_call.1} parent=1 // pred_fallthru
      _
    %v44 = vld [vmem:[#allocation3] sm:$0x1]
    %v45 = vld [vmem:[%s1] sm:$0x1]
    %v46 = vunpack.c.l.bf16 %v45
    %v47 = vand.u32 2147483647, %v44
    %v48 = vsub.f32 0.0, %v47
    %v49 = vmul.f32 %v48, 1.442695
    %v50 = vpow.pop %v49
    %v51 = vadd.f32 %v50, 1.0
    %v52 = vlog2.pop %v51
    %v53 = vmul.f32 %v52, 0.6931472
    %v54 = vmul.f32 -0.5, %v50
    %v55 = vadd.f32 %v54, 1.0
    %v56 = vmul.f32 %v55, %v50
    %v57 = vand.u32 2147483647, %v50
    %vm58 = vcmp.lt.f32.partialorder %v57, 0.0004427343
    %v59 = vsel %vm58, %v56, %v53
    %v60 = vmin.f32 %v44, 0.0
    %v61 = vsub.f32 %v60, %v59
    %v62 = vmax.f32 %v61, -100.0
    %v63 = vsub.f32 0.0, %v44
    %v64 = vmin.f32 %v63, 0.0
    %v65 = vsub.f32 %v64, %v59
    %v66 = vmax.f32 %v65, -100.0
    %v67 = vld [vmem:[#allocation2] sm:$0x1]
    %v68 = vmul.f32 %v46, %v62
    %v69 = vsub.f32 1.0, %v46
    %v70 = vmul.f32 %v69, %v66
    %v71 = vadd.f32 %v68, %v70
    %v72 = vsub.f32 0.0, %v71
    %v73 = vadd.f32 %v67, %v72
    %74 = vst [vmem:[#allocation2] sm:$0x1] %v73
    // Predicated region
    $region26: #{tpu_custom_call.1} parent=1 // pred_check
      %p75 = pneg %p39
    $region27: #{tpu_custom_call.1} parent=1 // pred_check_branch
      %77 = sbr.rel (%p75) target = $region29
    $region28: #{tpu_custom_call.1} parent=1 // pred_region
      %v78 = vld [vmem:[#allocation2] sm:$0x1]
      %vm79 = vcmask 1040384
      %v80 = vsel %vm79, %v78, 0.0
      %81 = vadd.xlane.f32.xlu0 %v80
      %v82 = vpop.xlane.xlu0 %81
      %v83 = vrot.slane %v82, 4
      %v84 = vadd.f32 %v82, %v83
      %v85 = vrot.slane %v84, 2
      %v86 = vadd.f32 %v84, %v85
      %v87 = vrot.slane %v86, 1
      %v88 = vadd.f32 %v86, %v87
      %s89 = vtos %v88
      %s90 = smul.f32 %s89, 0.0078125
      %v91 = vld [vmem:[#allocation6] sm:$0xf]
      %v92 = vmul.f32 %v91, %v91
      %vm93 = vcmask 1043456
      %v94 = vsel %vm93, %v92, 0.0
      %95 = vadd.xlane.f32.xlu0 %v94
      %v96 = vpop.xlane.xlu0 %95
      %v97 = vrot.slane %v96, 4
      %v98 = vadd.f32 %v96, %v97
      %v99 = vrot.slane %v98, 2
      %v100 = vadd.f32 %v98, %v99
      %v101 = vrot.slane %v100, 1
      %v102 = vadd.f32 %v100, %v101
      %s103 = vtos %v102
      %v104 = vstv %s103
      %v105 = vrsqrt.pop %v104
      %v106 = vmul.f32 %v104, %v105
      %vm107 = vcmp.eq.f32.partialorder %v104, inf
      %v108 = vsel %vm107, %v104, %v106
      %vm109 = vcmp.eq.f32.partialorder %v104, 0.0
      %v110 = vand.u32 %v104, 2147483648
      %v111 = vsel %vm109, %v110, %v108
      %s112 = vtos %v111
      %s113 = ssub.f32 %s112, 4.0
      %s114 = smul.f32 %s113, %s113
      %s115 = sadd.f32 %s114, 0.0
      %v116 = vld [vmem:[#allocation6 + $0x4] sm:$0x1]
      %v117 = vmul.f32 %v116, %v116
      %v118 = vsel %vm79, %v117, 0.0
      %119 = vadd.xlane.f32.xlu0 %v118
      %v120 = vpop.xlane.xlu0 %119
      %v121 = vrot.slane %v120, 4
      %v122 = vadd.f32 %v120, %v121
      %v123 = vrot.slane %v122, 2
      %v124 = vadd.f32 %v122, %v123
      %v125 = vrot.slane %v124, 1
      %v126 = vadd.f32 %v124, %v125
      %s127 = vtos %v126
      %v128 = vstv %s127
      %v129 = vrsqrt.pop %v128
      %v130 = vmul.f32 %v128, %v129
      %vm131 = vcmp.eq.f32.partialorder %v128, inf
      %v132 = vsel %vm131, %v128, %v130
      %vm133 = vcmp.eq.f32.partialorder %v128, 0.0
      %v134 = vand.u32 %v128, 2147483648
      %v135 = vsel %vm133, %v134, %v132
      %s136 = vtos %v135
      %s137 = ssub.f32 %s136, 5.656854
      %s138 = smul.f32 %s137, %s137
      %s139 = sadd.f32 %s115, %s138
      %s140 = smul.f32 %s139, 0.1
      %s141 = smul.f32 %s140, 0.5
      %s142 = sadd.f32 %s90, %s141
      %s143 = scalar_lea.smem [#allocation8], 0
      %144 = sst [smem:[%s143]] %s142
    $region29: #{tpu_custom_call.1} parent=1 // pred_fallthru
      _
    // Predicated region
    $region30: #{tpu_custom_call.1} parent=1 // pred_check
      _
    $region31: #{tpu_custom_call.1} parent=1 // pred_check_branch
      %146 = sbr.rel (0) target = $region33
    $region32: #{tpu_custom_call.1} parent=1 // pred_region
      %s148 = ssub.s32 16, 16
      %149 = vsyncadd [#allocation5], %s148
      %152 = dma.smem_to_hbm [#allocation8], 16, %s3, [#allocation5]
    $region33: #{tpu_custom_call.1} parent=1 // pred_fallthru
      _
    // Predicated region
    $region34: #{tpu_custom_call.1} parent=1 // pred_check
      _
    $region35: #{tpu_custom_call.1} parent=1 // pred_check_branch
      %154 = sbr.rel (0) target = $region37
    $region36: #{tpu_custom_call.1} parent=1 // pred_region
      %155 = dma.done [#allocation5], 16
    $region37: #{tpu_custom_call.1} parent=1 // pred_fallthru
      _
    %156 = sfence
    %157 = vsyncpa [#allocation4], 1
    %158 = vsyncpa [#allocation7], 1
    %159 = vsyncpa [#allocation5], 1

</llo_original>
